<compile_context>
chip_gen: v6e
topology: v6e:2x2x1
jax: 0.10.0
libtpu: 0.0.40
codegen_flags: <defaults>
</compile_context>

<pallas_src>
import functools

import jax
import jax.numpy as jnp
import numpy as np
from jax.experimental import pallas as pl
from jax.experimental.pallas import tpu as pltpu

BN_EPS = 1e-5
LANE = 128


def _round_up(n, m):
    return ((n + m - 1) // m) * m


def _wsc_layer_kernel(x_ref, w_ref, v_ref, out_ref, h_ref, *,
                      num_layers, d_in, use_bf16):
    """One grid step == one Linear (+ ReLU + BatchNorm1d) layer.

    x_ref:   (B, d_in)          un-padded input (consumed only at l == 0)
    w_ref:   (1, D_pad, D_pad)  this layer's padded, pre-transposed weight
    v_ref:   (1, 8, D_pad)      row 0 = bias, row 1 = gamma, row 2 = beta
    out_ref: (B, D_pad)         padded output of the final Linear
    h_ref:   (B, D_pad)         VMEM scratch carrying activations across layers
    """
    l = pl.program_id(0)
    d_pad = h_ref.shape[-1]

    # Layer 0: seed the activation carry from the (un-padded) input.
    @pl.when(l == 0)
    def _():
        if d_in == d_pad:
            h_ref[...] = x_ref[...]
        else:
            h_ref[...] = jnp.zeros_like(h_ref)
            h_ref[:, :d_in] = x_ref[...]

    w = w_ref[0]          # (D_pad, D_pad)
    v = v_ref[0]          # (8, D_pad): bias / gamma / beta rows
    b = v[0:1, :]
    h = h_ref[...]

    if use_bf16:
        # Large-batch path: single-pass bf16 MXU, f32 accumulation.
        y = jnp.dot(h.astype(jnp.bfloat16), w.astype(jnp.bfloat16),
                    preferred_element_type=jnp.float32)
    else:
        # Small-batch / exactness path: full-f32 matmul.
        y = jnp.dot(h, w, preferred_element_type=jnp.float32,
                    precision=jax.lax.Precision.HIGHEST)
    y = y + b

    @pl.when(l < num_layers - 1)
    def _():
        yr = jnp.maximum(y, 0.0)                       # ReLU
        # BatchNorm1d, training-mode forward: batch mean + biased variance.
        mean = jnp.mean(yr, axis=0, keepdims=True)
        centered = yr - mean                           # reused for var and y_hat
        var = jnp.mean(centered * centered, axis=0, keepdims=True)
        gamma = v[1:2, :]
        beta = v[2:3, :]
        # Padded lanes: centered == 0 and gamma == 0 -> result stays exactly 0.
        h_ref[...] = centered * jax.lax.rsqrt(var + BN_EPS) * gamma + beta

    @pl.when(l == num_layers - 1)
    def _():
        out_ref[...] = y


def init_params(key, encoder_struct):
    """Deterministic parameter init mirroring the PyTorch module's __init__."""
    params = []
    dep = len(encoder_struct)
    for i in range(dep - 1):
        fan_in = int(encoder_struct[i])
        fan_out = int(encoder_struct[i + 1])
        key, kw, kb = jax.random.split(key, 3)
        # kaiming_normal_ (fan_in mode, relu gain): std = sqrt(2 / fan_in)
        w = jax.random.normal(kw, (fan_in, fan_out), jnp.float32) * jnp.sqrt(
            2.0 / fan_in
        )
        # nn.Linear default bias init: U(-1/sqrt(fan_in), 1/sqrt(fan_in))
        bound = 1.0 / jnp.sqrt(fan_in)
        b = jax.random.uniform(
            kb, (fan_out,), jnp.float32, minval=-bound, maxval=bound
        )
        # BatchNorm1d default affine params
        gamma = jnp.ones((fan_out,), jnp.float32)
        beta = jnp.zeros((fan_out,), jnp.float32)
        params.append({"w": w, "b": b, "gamma": gamma, "beta": beta})
    return params


def pack_params(params, encoder_struct):
    """Zero-pad every layer to lane-dense tiles and stack for per-layer DMA.

    Note: layers are padded to the global max dim so they can be stacked into a
    single (L, D_pad, D_pad) operand indexed by the layer grid axis; for very
    ragged encoder_structs (e.g. [1024, 128, 16]) per-layer-padded separate
    operands would waste less MXU/VMEM, but at dims <= 128 it is identical.

    Returns:
      w_stack: (L, D_pad, D_pad) float32, pre-transposed (x @ W == x @ weight.T)
      v_stack: (L, 8, D_pad)     float32, rows: [bias, gamma, beta, 0, ...]
    """
    d_pad = max(_round_up(int(d), LANE) for d in encoder_struct)
    ws, vs = [], []
    for p in params:
        fan_in, fan_out = p["w"].shape
        w = jnp.zeros((d_pad, d_pad), jnp.float32).at[:fan_in, :fan_out].set(p["w"])
        v = jnp.zeros((8, d_pad), jnp.float32)
        v = v.at[0, :fan_out].set(p["b"])
        v = v.at[1, :fan_out].set(p["gamma"])
        v = v.at[2, :fan_out].set(p["beta"])
        ws.append(w)
        vs.append(v)
    return jnp.stack(ws), jnp.stack(vs)


@functools.partial(jax.jit, static_argnums=(3,))
def wsc_1det_struct_forward(x, w_stack, v_stack, out_dim):
    """Forward pass of WSC_1det_struct as one fused, layer-pipelined Pallas kernel.

    Call with the full logical batch (do not micro-batch): the launch cost is
    amortized and BN statistics are per-call, matching PyTorch's per-batch stats.
    """
    B, d_in = x.shape
    num_layers, d_pad, _ = w_stack.shape
    # Static (shape-derived) gate: bf16 MXU only pays off once the matmul,
    # not launch latency, dominates.
    use_bf16 = B >= 256

    kernel = functools.partial(
        _wsc_layer_kernel, num_layers=num_layers, d_in=d_in, use_bf16=use_bf16
    )
    out_pad = pl.pallas_call(
        kernel,
        out_shape=jax.ShapeDtypeStruct((B, d_pad), jnp.float32),
        grid=(num_layers,),
        in_specs=[
            # Input: full-array block, resident across the layer axis.
            pl.BlockSpec((B, d_in), lambda l: (0, 0)),
            # Per-layer weight tile: streamed (double-buffered) over the grid.
            pl.BlockSpec((1, d_pad, d_pad), lambda l: (l, 0, 0)),
            # Per-layer bias/gamma/beta tile.
            pl.BlockSpec((1, 8, d_pad), lambda l: (l, 0, 0)),
        ],
        # Same output block every step -> resident; written only at l == L-1.
        out_specs=pl.BlockSpec((B, d_pad), lambda l: (0, 0)),
        scratch_shapes=[pltpu.VMEM((B, d_pad), jnp.float32)],
        compiler_params=pltpu.CompilerParams(
            dimension_semantics=("arbitrary",),   # sequential carry across layers
            vmem_limit_bytes=32 * 1024 * 1024,    # explicit; safe on v5e/v6e/v7x
        ),
    )(x, w_stack, v_stack)
    return out_pad[:, :out_dim]


def _reference_forward(x, params, dep):
    """Pure-JAX reference (PyTorch training-mode semantics) for validation."""
    h = x
    for i, p in enumerate(params):
        h = (
            jnp.dot(h, p["w"], precision=jax.lax.Precision.HIGHEST)
            + p["b"][None, :]
        )
        if i < dep - 2:
            h = jnp.maximum(h, 0.0)
            mean = jnp.mean(h, axis=0, keepdims=True)
            var = jnp.mean((h - mean) ** 2, axis=0, keepdims=True)
            h = (h - mean) * jax.lax.rsqrt(var + BN_EPS)
            h = h * p["gamma"][None, :] + p["beta"][None, :]
    return h


if __name__ == "__main__":
    encoder_struct = [32, 64, 48, 16]  # dep = 4 -> 3 Linear layers
    batch = 8

    key = jax.random.PRNGKey(0)
    key, kx = jax.random.split(key)
    x = jax.random.normal(kx, (batch, encoder_struct[0]), jnp.float32)

    params = init_params(key, encoder_struct)
    w_stack, v_stack = pack_params(params, encoder_struct)

    out = wsc_1det_struct_forward(x, w_stack, v_stack, encoder_struct[-1])
    jax.block_until_ready(out)

    assert out.shape == (batch, encoder_struct[-1]), out.shape
    assert jnp.all(jnp.isfinite(out))

    # Correctness vs pure-JAX reference of the PyTorch module (training mode).
    # Both sides use f32 Precision.HIGHEST, so the tolerance is tight enough to
    # catch an accidental drop to reduced-precision MXU passes.
    ref = _reference_forward(x, params, len(encoder_struct))
    np.testing.assert_allclose(np.asarray(out), np.asarray(ref), rtol=1e-4, atol=1e-4)

    # TODO(synk): running_mean/running_var buffer updates of BatchNorm1d (a
    # training-time side effect) are not modeled; only the forward output is.
    print("KERNEL_OK")
</pallas_src>

<mosaic_0001>
module attributes {stable_mosaic.version = 11 : i64} {
  func.func @_wsc_layer_kernel(%arg0: i32, %arg1: memref<8x32xf32, #tpu.memory_space<vmem>>, %arg2: memref<1x128x128xf32, #tpu.memory_space<vmem>>, %arg3: memref<1x8x128xf32, #tpu.memory_space<vmem>>, %arg4: memref<8x128xf32, #tpu.memory_space<vmem>>, %arg5: memref<8x128xf32, #tpu.memory_space<vmem>>) attributes {dimension_semantics = [#tpu.dimension_semantics<arbitrary>], iteration_bounds = array<i64: 3>, scalar_prefetch = 0 : i64, scratch_operands = 1 : i64, tpu.core_type = #tpu.core_type<tc>, window_params = [{pipeline_mode = #tpu.pipeline_mode<synchronous>, transform_indices = @transform_0, window_bounds = array<i64: 8, 32>}, {transform_indices = @transform_1, window_bounds = array<i64: 1, 128, 128>}, {transform_indices = @transform_2, window_bounds = array<i64: 1, 8, 128>}, {pipeline_mode = #tpu.pipeline_mode<synchronous>, transform_indices = @transform_3, window_bounds = array<i64: 8, 128>}]} {
    %c0_i32 = arith.constant 0 : i32
    %0 = arith.cmpi eq, %arg0, %c0_i32 : i32
    %1 = arith.extui %0 : i1 to i32
    %c0_i32_0 = arith.constant 0 : i32
    %2 = arith.cmpi ne, %1, %c0_i32_0 : i32
    scf.if %2 {
      %cst_11 = arith.constant 0.000000e+00 : f32
      %18 = vector.broadcast %cst_11 : f32 to vector<8x128xf32>
      %c0_12 = arith.constant 0 : index
      %c0_13 = arith.constant 0 : index
      %19 = vector.load %arg5[%c0_12, %c0_13] : memref<8x128xf32, #tpu.memory_space<vmem>>, vector<8x128xf32>
      tpu.vector_store %arg5[%c0_12, %c0_13], %18 {strides = array<i32>} : memref<8x128xf32, #tpu.memory_space<vmem>>, vector<8x128xf32>,
      %c0_14 = arith.constant 0 : index
      %c0_15 = arith.constant 0 : index
      %20 = vector.load %arg1[%c0_14, %c0_15] : memref<8x32xf32, #tpu.memory_space<vmem>>, vector<8x32xf32>
      %c0_16 = arith.constant 0 : index
      %c0_17 = arith.constant 0 : index
      %21 = vector.load %arg5[%c0_16, %c0_17] : memref<8x128xf32, #tpu.memory_space<vmem>>, vector<8x32xf32>
      tpu.vector_store %arg5[%c0_16, %c0_17], %20 {strides = array<i32>} : memref<8x128xf32, #tpu.memory_space<vmem>>, vector<8x32xf32>,
    } else {
    }
    %c0 = arith.constant 0 : index
    %c0_1 = arith.constant 0 : index
    %c0_2 = arith.constant 0 : index
    %3 = vector.load %arg2[%c0, %c0_1, %c0_2] : memref<1x128x128xf32, #tpu.memory_space<vmem>>, vector<1x128x128xf32>
    %4 = vector.shape_cast %3 : vector<1x128x128xf32> to vector<128x128xf32>
    %c0_3 = arith.constant 0 : index
    %c0_4 = arith.constant 0 : index
    %c0_5 = arith.constant 0 : index
    %5 = vector.load %arg3[%c0_3, %c0_4, %c0_5] : memref<1x8x128xf32, #tpu.memory_space<vmem>>, vector<1x8x128xf32>
    %6 = vector.shape_cast %5 : vector<1x8x128xf32> to vector<8x128xf32>
    %7 = vector.extract_strided_slice %6 {offsets = [0, 0], sizes = [1, 128], strides = [1, 1]} : vector<8x128xf32> to vector<1x128xf32>
    %c0_6 = arith.constant 0 : index
    %c0_7 = arith.constant 0 : index
    %8 = vector.load %arg5[%c0_6, %c0_7] : memref<8x128xf32, #tpu.memory_space<vmem>>, vector<8x128xf32>
    %cst = arith.constant dense<0.000000e+00> : vector<8x128xf32>
    %9 = tpu.matmul %8, %4, %cst {dimension_numbers = #tpu.dot_dimension_numbers<[1], [0], [0], [1], [0, 0, 1, 1], [], []>, precision = #tpu.contract_precision<fp32>} : vector<8x128xf32>, vector<128x128xf32>, vector<8x128xf32> -> vector<8x128xf32>
    %10 = vector.broadcast %7 : vector<1x128xf32> to vector<8x128xf32>
    %11 = arith.addf %9, %10 : vector<8x128xf32>
    %c2_i32 = arith.constant 2 : i32
    %12 = arith.cmpi slt, %arg0, %c2_i32 : i32
    %13 = arith.extui %12 : i1 to i32
    %c0_i32_8 = arith.constant 0 : i32
    %14 = arith.cmpi ne, %13, %c0_i32_8 : i32
    scf.if %14 {
      %cst_11 = arith.constant 0.000000e+00 : f32
      %18 = vector.broadcast %cst_11 : f32 to vector<8x128xf32>
      %19 = arith.maximumf %11, %18 : vector<8x128xf32>
      %cst_12 = arith.constant dense<0.000000e+00> : vector<128xf32>
      %20 = vector.multi_reduction <add>, %19, %cst_12 [0] : vector<8x128xf32> to vector<128xf32>
      %21 = vector.shape_cast %20 : vector<128xf32> to vector<1x128xf32>
      %cst_13 = arith.constant 8.000000e+00 : f32
      %22 = vector.broadcast %cst_13 : f32 to vector<1x128xf32>
      %23 = arith.divf %21, %22 : vector<1x128xf32>
      %24 = vector.broadcast %23 : vector<1x128xf32> to vector<8x128xf32>
      %25 = arith.subf %19, %24 : vector<8x128xf32>
      %26 = arith.mulf %25, %25 : vector<8x128xf32>
      %cst_14 = arith.constant dense<0.000000e+00> : vector<128xf32>
      %27 = vector.multi_reduction <add>, %26, %cst_14 [0] : vector<8x128xf32> to vector<128xf32>
      %28 = vector.shape_cast %27 : vector<128xf32> to vector<1x128xf32>
      %cst_15 = arith.constant 8.000000e+00 : f32
      %29 = vector.broadcast %cst_15 : f32 to vector<1x128xf32>
      %30 = arith.divf %28, %29 : vector<1x128xf32>
      %31 = vector.extract_strided_slice %6 {offsets = [1, 0], sizes = [1, 128], strides = [1, 1]} : vector<8x128xf32> to vector<1x128xf32>
      %32 = vector.extract_strided_slice %6 {offsets = [2, 0], sizes = [1, 128], strides = [1, 1]} : vector<8x128xf32> to vector<1x128xf32>
      %cst_16 = arith.constant 9.99999974E-6 : f32
      %33 = vector.broadcast %cst_16 : f32 to vector<1x128xf32>
      %34 = arith.addf %30, %33 : vector<1x128xf32>
      %35 = math.rsqrt %34 : vector<1x128xf32>
      %36 = vector.broadcast %35 : vector<1x128xf32> to vector<8x128xf32>
      %37 = arith.mulf %25, %36 : vector<8x128xf32>
      %38 = vector.broadcast %31 : vector<1x128xf32> to vector<8x128xf32>
      %39 = arith.mulf %37, %38 : vector<8x128xf32>
      %40 = vector.broadcast %32 : vector<1x128xf32> to vector<8x128xf32>
      %41 = arith.addf %39, %40 : vector<8x128xf32>
      %c0_17 = arith.constant 0 : index
      %c0_18 = arith.constant 0 : index
      %42 = vector.load %arg5[%c0_17, %c0_18] : memref<8x128xf32, #tpu.memory_space<vmem>>, vector<8x128xf32>
      tpu.vector_store %arg5[%c0_17, %c0_18], %41 {strides = array<i32>} : memref<8x128xf32, #tpu.memory_space<vmem>>, vector<8x128xf32>,
    } else {
    }
    %c2_i32_9 = arith.constant 2 : i32
    %15 = arith.cmpi eq, %arg0, %c2_i32_9 : i32
    %16 = arith.extui %15 : i1 to i32
    %c0_i32_10 = arith.constant 0 : i32
    %17 = arith.cmpi ne, %16, %c0_i32_10 : i32
    scf.if %17 {
      %c0_11 = arith.constant 0 : index
      %c0_12 = arith.constant 0 : index
      %18 = vector.load %arg4[%c0_11, %c0_12] : memref<8x128xf32, #tpu.memory_space<vmem>>, vector<8x128xf32>
      tpu.vector_store %arg4[%c0_11, %c0_12], %11 {strides = array<i32>} : memref<8x128xf32, #tpu.memory_space<vmem>>, vector<8x128xf32>,
    } else {
    }
    return
  }
  func.func @transform_0(%arg0: i32) -> (i32, i32) {
    %c0_i32 = arith.constant 0 : i32
    %c0_i32_0 = arith.constant 0 : i32
    %c0_i32_1 = arith.constant 0 : i32
    return %c0_i32, %c0_i32_0 : i32, i32
  }
  func.func @transform_1(%arg0: i32) -> (i32, i32, i32) {
    %c0_i32 = arith.constant 0 : i32
    %c0_i32_0 = arith.constant 0 : i32
    %c0_i32_1 = arith.constant 0 : i32
    return %arg0, %c0_i32, %c0_i32_0 : i32, i32, i32
  }
  func.func @transform_2(%arg0: i32) -> (i32, i32, i32) {
    %c0_i32 = arith.constant 0 : i32
    %c0_i32_0 = arith.constant 0 : i32
    %c0_i32_1 = arith.constant 0 : i32
    return %arg0, %c0_i32, %c0_i32_0 : i32, i32, i32
  }
  func.func @transform_3(%arg0: i32) -> (i32, i32) {
    %c0_i32 = arith.constant 0 : i32
    %c0_i32_0 = arith.constant 0 : i32
    %c0_i32_1 = arith.constant 0 : i32
    return %c0_i32, %c0_i32_0 : i32, i32
  }
}

</mosaic_0001>

<llo_original>
// kernel: wsc_1det_struct_forward.1
$region0: #{wsc_1det_struct_forward.1}
  #allocation0 [shape = 'u32[]', space=smem, size = 0x4, offset = 0x4, fixed_abs, tag = 'smem constant byte address 0x4 - core index']
  #allocation1 [shape = 'u32[144,128]{1,0:T(1,128)}', space=vmem, size = 0x12000, scoped, tag = 'internal scratch']
  #allocation2 [shape = 'f32[8,128]{1,0:T(8,128)}', space=vmem, size = 0x1000, scoped, tag = 'scratch operand']
  %s0 = inlined_call_operand.hbm [shape: f32[8,32], index: 0, kind: input, shape index: {}]
  %s1 = inlined_call_operand.hbm [shape: f32[3,128,128], index: 1, kind: input, shape index: {}]
  %s2 = inlined_call_operand.hbm [shape: f32[3,8,128], index: 2, kind: input, shape index: {}]
  %s3 = inlined_call_operand.hbm [shape: f32[8,128], index: 3, kind: output, shape index: {}]
  %s4 = sld [smem:[#allocation0]]
  $region69: #{wsc_1det_struct_forward.1} parent=0
    _
  %s6 = ssub.s32 1, %s4
  %s7 = scalar_select 0, %s6, %s4
  $region1: #{wsc_1det_struct_forward.1} parent=0
    #allocation3 [shape = 'u8[4096]{0}', space=vmem, size = 0x1000, scoped, tag = 'input window, operand 0, single buffered']
    #allocation4 [shape = 's32[2]{0}', space=sflag, size = 0x8, scoped, tag = 'scoped memory for wsc_1det_struct_forward.1']
    #allocation5 [shape = 's32[2]{0}', space=sflag, size = 0x8, scoped, tag = 'scoped memory for wsc_1det_struct_forward.1']
    #allocation6 [shape = 'u8[131072]{0}', space=vmem, size = 0x20000, scoped, tag = 'input window, operand 1']
    #allocation7 [shape = 's32[2]{0}', space=sflag, size = 0x8, scoped, tag = 'scoped memory for wsc_1det_struct_forward.1']
    #allocation8 [shape = 'u8[8192]{0}', space=vmem, size = 0x2000, scoped, tag = 'input window, operand 2']
    #allocation9 [shape = 'u8[4096]{0}', space=vmem, size = 0x1000, scoped, tag = 'output window, operand 0, single buffered']
    %8 = vsyncpa [#allocation4], 0
    %9 = vsyncpa [#allocation7], 0
    %s10 = scalar_lea.sflag [#allocation7], 1
    %11 = vsyncpa %s10, 0
    %12 = vsyncpa [#allocation5], 0
    loop: start=0, step=1, limit=5
    $region2: #{wsc_1det_struct_forward.1} parent=1 // loop_pre_header
      _
    $region3: #{wsc_1det_struct_forward.1} parent=1 // loop_header
      %s14 = sphi 0, %s18
      %p15 = scmp.ge.s32.totalorder %s14, 5
      %s22 = sphi 0, %s22
      %s24 = sphi 0, %s22
      %s25 = sphi 0, %s24
      %s39 = sphi 0, %s25
      %s45 = sphi 0, %s47
      %s48 = sphi 0, %s45
      %s49 = sphi 0, %s48
      %s65 = sphi 0, %s49
      %s71 = sphi 0, %s73
      %s74 = sphi 0, %s71
      %s75 = sphi 0, %s74
      %s91 = sphi 0, %s75
      %s95 = sphi 0, %s95
      %s97 = sphi 0, %s95
      %s98 = sphi 0, %s97
      %s112 = sphi 0, %s98
    $region4: #{wsc_1det_struct_forward.1} parent=1 // loop_header_branch
      %17 = sbr.rel (%p15) target = $region8
    $region5: #{wsc_1det_struct_forward.1} parent=1 // loop_body
      %s19 = ssub.s32 %s14, 1
      %s20 = ssub.s32 %s14, 2
      %s21 = sadd.s32 %s14, 1
      %s23 = sadd.s32 %s22, 1
      %p26 = scmp.eq.s32.totalorder %s14, 2
      %p27 = scmp.ne.s32.totalorder %s22, %s24
      %p28 = scmp.eq.s32.totalorder %s14, 0
      %p29 = por %p27, %p28
      %p30 = scmp.ne.s32.totalorder %s22, %s24
      %p31 = scmp.eq.s32.totalorder %s19, 2
      %p32 = por %p30, %p31
      %p33 = scmp.ne.s32.totalorder %s24, %s25
      %p34 = scmp.eq.s32.totalorder %s19, 0
      %p35 = por %p33, %p34
      %p36 = scmp.ne.s32.totalorder %s24, %s25
      %p37 = scmp.eq.s32.totalorder %s20, 2
      %p38 = por %p36, %p37
      %p40 = scmp.ne.s32.totalorder %s25, %s39
      %p41 = scmp.eq.s32.totalorder %s20, 0
      %p42 = por %p40, %p41
      %s43 = ssub.s32 %s14, %s21
      %p44 = scmp.eq.s32.totalorder %s43, 0
      %s46 = sadd.s32 %s45, 1
      %s47 = scalar_select %p44, %s45, %s46
      %p50 = pneg %p44
      %p51 = scmp.eq.s32.totalorder %s14, 2
      %p52 = por %p50, %p51
      %p53 = scmp.ne.s32.totalorder %s45, %s48
      %p54 = scmp.eq.s32.totalorder %s14, 0
      %p55 = por %p53, %p54
      %p56 = scmp.ne.s32.totalorder %s45, %s48
      %p57 = scmp.eq.s32.totalorder %s19, 2
      %p58 = por %p56, %p57
      %p59 = scmp.ne.s32.totalorder %s48, %s49
      %p60 = scmp.eq.s32.totalorder %s19, 0
      %p61 = por %p59, %p60
      %p62 = scmp.ne.s32.totalorder %s48, %s49
      %p63 = scmp.eq.s32.totalorder %s20, 2
      %p64 = por %p62, %p63
      %p66 = scmp.ne.s32.totalorder %s49, %s65
      %p67 = scmp.eq.s32.totalorder %s20, 0
      %p68 = por %p66, %p67
      %s69 = ssub.s32 %s14, %s21
      %p70 = scmp.eq.s32.totalorder %s69, 0
      %s72 = sadd.s32 %s71, 1
      %s73 = scalar_select %p70, %s71, %s72
      %p76 = pneg %p70
      %p77 = scmp.eq.s32.totalorder %s14, 2
      %p78 = por %p76, %p77
      %p79 = scmp.ne.s32.totalorder %s71, %s74
      %p80 = scmp.eq.s32.totalorder %s14, 0
      %p81 = por %p79, %p80
      %p82 = scmp.ne.s32.totalorder %s71, %s74
      %p83 = scmp.eq.s32.totalorder %s19, 2
      %p84 = por %p82, %p83
      %p85 = scmp.ne.s32.totalorder %s74, %s75
      %p86 = scmp.eq.s32.totalorder %s19, 0
      %p87 = por %p85, %p86
      %p88 = scmp.ne.s32.totalorder %s74, %s75
      %p89 = scmp.eq.s32.totalorder %s20, 2
      %p90 = por %p88, %p89
      %p92 = scmp.ne.s32.totalorder %s75, %s91
      %p93 = scmp.eq.s32.totalorder %s20, 0
      %p94 = por %p92, %p93
      %s96 = sadd.s32 %s95, 1
      %p99 = scmp.eq.s32.totalorder %s14, 2
      %p100 = scmp.ne.s32.totalorder %s95, %s97
      %p101 = scmp.eq.s32.totalorder %s14, 0
      %p102 = por %p100, %p101
      %p103 = scmp.ne.s32.totalorder %s95, %s97
      %p104 = scmp.eq.s32.totalorder %s19, 2
      %p105 = por %p103, %p104
      %p106 = scmp.ne.s32.totalorder %s97, %s98
      %p107 = scmp.eq.s32.totalorder %s19, 0
      %p108 = por %p106, %p107
      %p109 = scmp.ne.s32.totalorder %s97, %s98
      %p110 = scmp.eq.s32.totalorder %s20, 2
      %p111 = por %p109, %p110
      %p113 = scmp.ne.s32.totalorder %s98, %s112
      %p114 = scmp.eq.s32.totalorder %s20, 0
      %p115 = por %p113, %p114
      %p116 = scmp.le.s32.totalorder 1, %s14
      %p117 = scmp.lt.s32.totalorder %s14, 4
      %p118 = pnand %p116, %p117
      %p119 = pneg %p118
      // Predicated region
      $region9: #{wsc_1det_struct_forward.1} parent=5 // pred_check
        _
      $region10: #{wsc_1det_struct_forward.1} parent=5 // pred_check_branch
        %121 = sbr.rel (%p118) target = $region12
      $region11: #{wsc_1det_struct_forward.1} parent=5 // pred_region
        %s122 = ssub.s32 %s14, 1
        // Predicated region
        $region13: #{wsc_1det_struct_forward.1} parent=11 // pred_check
          %p123 = pneg %p35
        $region14: #{wsc_1det_struct_forward.1} parent=11 // pred_check_branch
          %125 = sbr.rel (%p123) target = $region16
        $region15: #{wsc_1det_struct_forward.1} parent=11 // pred_region
          %s127 = ssub.s32 128, 128
          %128 = vsyncadd [#allocation4], %s127
          %s130 = sshll.u32 [#allocation3], 4
          %s131 = int_to_ptr.vmem [resolvable:$true] %s130
          %133 = dma.hbm_to_vmem [thread:$0]  %s0, 128, %s131, [#allocation4]
        $region16: #{wsc_1det_struct_forward.1} parent=11 // pred_fallthru
          _
      $region12: #{wsc_1det_struct_forward.1} parent=5 // pred_fallthru
        _
      %p134 = scmp.lt.s32.totalorder %s14, 3
      // Predicated region
      $region17: #{wsc_1det_struct_forward.1} parent=5 // pred_check
        %p135 = pneg %p134
      $region18: #{wsc_1det_struct_forward.1} parent=5 // pred_check_branch
        %137 = sbr.rel (%p135) target = $region20
      $region19: #{wsc_1det_struct_forward.1} parent=5 // pred_region
        // Predicated region
        $region21: #{wsc_1det_struct_forward.1} parent=19 // pred_check
          %p138 = pneg %p55
        $region22: #{wsc_1det_struct_forward.1} parent=19 // pred_check_branch
          %140 = sbr.rel (%p138) target = $region24
        $region23: #{wsc_1det_struct_forward.1} parent=19 // pred_region
          %s141 = sand.u32 %s14, 1
          %s142 = scalar_lea.sflag [#allocation7], %s141
          %s143 = sand.u32 %s45, 1
          %s144 = smul.addr %s143, 128
          %s145 = scalar_lea.vmem [#allocation6], %s144
          %s147 = ssub.s32 2048, 2048
          %148 = vsyncadd %s142, %s147
          %s149 = smul.addr %s14, 16
          %s150 = smul.addr %s149, 128
          %s151 = scalar_lea.hbm %s1, %s150
          %s152 = sshll.u32 %s145, 4
          %s153 = int_to_ptr.vmem [resolvable:$true] %s152
          %158 = dma.hbm_to_vmem [thread:$0]  %s151, 2048, %s153, %s142, 128, 128, 8
        $region24: #{wsc_1det_struct_forward.1} parent=19 // pred_fallthru
          _
        // Predicated region
        $region25: #{wsc_1det_struct_forward.1} parent=19 // pred_check
          %p159 = pneg %p81
        $region26: #{wsc_1det_struct_forward.1} parent=19 // pred_check_branch
          %161 = sbr.rel (%p159) target = $region28
        $region27: #{wsc_1det_struct_forward.1} parent=19 // pred_region
          %s162 = sand.u32 %s14, 1
          %s163 = scalar_lea.sflag [#allocation7], %s162
          %s164 = sand.u32 %s71, 1
          %s165 = smul.addr %s164, 8
          %s166 = scalar_lea.vmem [#allocation8], %s165
          %s168 = ssub.s32 128, 128
          %169 = vsyncadd %s163, %s168
          %s170 = smul.addr %s14, 128
          %s171 = scalar_lea.hbm %s2, %s170
          %s173 = sshll.u32 %s166, 4
          %s174 = int_to_ptr.vmem [resolvable:$true] %s173
          %176 = dma.hbm_to_vmem [thread:$0]  %s171, 128, %s174, %s163
        $region28: #{wsc_1det_struct_forward.1} parent=19 // pred_fallthru
          _
      $region20: #{wsc_1det_struct_forward.1} parent=5 // pred_fallthru
        _
      %p177 = scmp.le.s32.totalorder 1, %s14
      %p178 = scmp.lt.s32.totalorder %s14, 4
      %p179 = pnand %p177, %p178
      %p180 = pneg %p179
      // Predicated region
      $region29: #{wsc_1det_struct_forward.1} parent=5 // pred_check
        _
      $region30: #{wsc_1det_struct_forward.1} parent=5 // pred_check_branch
        %182 = sbr.rel (%p179) target = $region32
      $region31: #{wsc_1det_struct_forward.1} parent=5 // pred_region
        %s183 = ssub.s32 %s14, 1
        // Predicated region
        $region33: #{wsc_1det_struct_forward.1} parent=31 // pred_check
          %p184 = pneg %p35
        $region34: #{wsc_1det_struct_forward.1} parent=31 // pred_check_branch
          %186 = sbr.rel (%p184) target = $region36
        $region35: #{wsc_1det_struct_forward.1} parent=31 // pred_region
          %187 = dma.done [#allocation4], 128
        $region36: #{wsc_1det_struct_forward.1} parent=31 // pred_fallthru
          _
        %s188 = sand.u32 %s19, 1
        %s189 = scalar_lea.sflag [#allocation7], %s188
        %s190 = sand.u32 %s48, 1
        %s191 = smul.addr %s190, 128
        %s192 = scalar_lea.vmem [#allocation6], %s191
        // Predicated region
        $region37: #{wsc_1det_struct_forward.1} parent=31 // pred_check
          %p193 = pneg %p61
        $region38: #{wsc_1det_struct_forward.1} parent=31 // pred_check_branch
          %195 = sbr.rel (%p193) target = $region40
        $region39: #{wsc_1det_struct_forward.1} parent=31 // pred_region
          %196 = dma.done %s189, 2048
        $region40: #{wsc_1det_struct_forward.1} parent=31 // pred_fallthru
          _
        %s197 = sand.u32 %s19, 1
        %s198 = scalar_lea.sflag [#allocation7], %s197
        %s199 = sand.u32 %s74, 1
        %s200 = smul.addr %s199, 8
        %s201 = scalar_lea.vmem [#allocation8], %s200
        // Predicated region
        $region41: #{wsc_1det_struct_forward.1} parent=31 // pred_check
          %p202 = pneg %p87
        $region42: #{wsc_1det_struct_forward.1} parent=31 // pred_check_branch
          %204 = sbr.rel (%p202) target = $region44
        $region43: #{wsc_1det_struct_forward.1} parent=31 // pred_region
          %205 = dma.done %s198, 128
        $region44: #{wsc_1det_struct_forward.1} parent=31 // pred_fallthru
          _
        %p206 = pneg %p35
        %p207 = pneg %p32
        %s208 = sand.u32 %s19, 1
        %s209 = scalar_lea.sflag [#allocation7], %s208
        %s210 = sand.u32 %s48, 1
        %s211 = smul.addr %s210, 128
        %s212 = scalar_lea.vmem [#allocation6], %s211
        %p213 = pneg %p61
        %p214 = pneg %p58
        %s215 = sand.u32 %s19, 1
        %s216 = scalar_lea.sflag [#allocation7], %s215
        %s217 = sand.u32 %s74, 1
        %s218 = smul.addr %s217, 8
        %s219 = scalar_lea.vmem [#allocation8], %s218
        %p220 = pneg %p87
        %p221 = pneg %p84
        %p222 = pneg %p108
        %p223 = pneg %p105
        %p224 = scmp.eq.s32.totalorder %s19, 0
        // Predicated region
        $region45: #{wsc_1det_struct_forward.1} parent=31 // pred_check
          %p225 = pneg %p224
        $region46: #{wsc_1det_struct_forward.1} parent=31 // pred_check_branch
          %227 = sbr.rel (%p225) target = $region48
        $region47: #{wsc_1det_struct_forward.1} parent=31 // pred_region
          %228 = vst [vmem:[#allocation2] sm:$0xff] 0.0
          %v229 = vld [vmem:[#allocation3] sm:$0xff]
          %vm230 = vcmask 261120
          %231 = vst.msk [vmem:[#allocation2] sm:$0xff] %vm230, %v229
        $region48: #{wsc_1det_struct_forward.1} parent=31 // pred_fallthru
          _
        %v232 = vld [vmem:[%s192] sm:$0xff]
        %v233 = vld [vmem:[%s192 + $0x8] sm:$0xff]
        %v234 = vld [vmem:[%s192 + $0x10] sm:$0xff]
        %v235 = vld [vmem:[%s192 + $0x18] sm:$0xff]
        %v236 = vld [vmem:[%s192 + $0x20] sm:$0xff]
        %v237 = vld [vmem:[%s192 + $0x28] sm:$0xff]
        %v238 = vld [vmem:[%s192 + $0x30] sm:$0xff]
        %v239 = vld [vmem:[%s192 + $0x38] sm:$0xff]
        %v240 = vld [vmem:[%s192 + $0x40] sm:$0xff]
        %v241 = vld [vmem:[%s192 + $0x48] sm:$0xff]
        %v242 = vld [vmem:[%s192 + $0x50] sm:$0xff]
        %v243 = vld [vmem:[%s192 + $0x58] sm:$0xff]
        %v244 = vld [vmem:[%s192 + $0x60] sm:$0xff]
        %v245 = vld [vmem:[%s192 + $0x68] sm:$0xff]
        %v246 = vld [vmem:[%s192 + $0x70] sm:$0xff]
        %v247 = vld [vmem:[%s192 + $0x78] sm:$0xff]
        %v248 = vld [vmem:[%s201] sm:$0xff]
        %v249 = vld [vmem:[#allocation2] sm:$0xff]
        %v250 = vlaneseq
        %v251 = vshrl.u32 %v250, 7
        %v252 = vsub.s32 0, %v251
        %v253 = vrot.slane %v248, %v252
        %254 = vmatprep.subr.mxu0 0.0
        %v255 = vand.u32 %v247, 4294901760
        %256 = vmatpush1.msra.mxu0 %v255
        %257 = vmatprep.subr.mxu0 0.0
        %v258 = vand.u32 %v246, 4294901760
        %259 = vmatpush1.msra.mxu0 %v258
        %260 = vmatprep.subr.mxu0 0.0
        %v261 = vand.u32 %v245, 4294901760
        %262 = vmatpush1.msra.mxu0 %v261
        %263 = vmatprep.subr.mxu0 0.0
        %v264 = vand.u32 %v244, 4294901760
        %265 = vmatpush1.msra.mxu0 %v264
        %266 = vmatprep.subr.mxu0 0.0
        %v267 = vand.u32 %v243, 4294901760
        %268 = vmatpush1.msra.mxu0 %v267
        %269 = vmatprep.subr.mxu0 0.0
        %v270 = vand.u32 %v242, 4294901760
        %271 = vmatpush1.msra.mxu0 %v270
        %272 = vmatprep.subr.mxu0 0.0
        %v273 = vand.u32 %v241, 4294901760
        %274 = vmatpush1.msra.mxu0 %v273
        %275 = vmatprep.subr.mxu0 0.0
        %v276 = vand.u32 %v240, 4294901760
        %277 = vmatpush1.msra.mxu0 %v276
        %278 = vmatprep.subr.mxu0 0.0
        %v279 = vand.u32 %v239, 4294901760
        %280 = vmatpush1.msra.mxu0 %v279
        %281 = vmatprep.subr.mxu0 0.0
        %v282 = vand.u32 %v238, 4294901760
        %283 = vmatpush1.msra.mxu0 %v282
        %284 = vmatprep.subr.mxu0 0.0
        %v285 = vand.u32 %v237, 4294901760
        %286 = vmatpush1.msra.mxu0 %v285
        %287 = vmatprep.subr.mxu0 0.0
        %v288 = vand.u32 %v236, 4294901760
        %289 = vmatpush1.msra.mxu0 %v288
        %290 = vmatprep.subr.mxu0 0.0
        %v291 = vand.u32 %v235, 4294901760
        %292 = vmatpush1.msra.mxu0 %v291
        %293 = vmatprep.subr.mxu0 0.0
        %v294 = vand.u32 %v234, 4294901760
        %295 = vmatpush1.msra.mxu0 %v294
        %296 = vmatprep.subr.mxu0 0.0
        %v297 = vand.u32 %v233, 4294901760
        %298 = vmatpush1.msra.mxu0 %v297
        %299 = vmatprep.subr.mxu0 0.0
        %v300 = vand.u32 %v232, 4294901760
        %301 = vmatpush1.msra.mxu0 %v300
        %302 = vmatprep.subr.mxu0 0.0
        %303 = vmatpush2.msra.mxu0 0.0
        %304 = vmatprep.subr.mxu0 0.0
        %305 = vmatpush2.msra.mxu0 0.0
        %306 = vmatprep.subr.mxu0 0.0
        %307 = vmatpush2.msra.mxu0 0.0
        %308 = vmatprep.subr.mxu0 0.0
        %309 = vmatpush2.msra.mxu0 0.0
        %310 = vmatprep.subr.mxu0 0.0
        %311 = vmatpush2.msra.mxu0 0.0
        %312 = vmatprep.subr.mxu0 0.0
        %313 = vmatpush2.msra.mxu0 0.0
        %314 = vmatprep.subr.mxu0 0.0
        %315 = vmatpush2.msra.mxu0 0.0
        %316 = vmatprep.subr.mxu0 0.0
        %317 = vmatpush2.msra.mxu0 0.0
        %318 = vmatprep.subr.mxu0 0.0
        %319 = vmatpush2.msra.mxu0 0.0
        %320 = vmatprep.subr.mxu0 0.0
        %321 = vmatpush2.msra.mxu0 0.0
        %322 = vmatprep.subr.mxu0 0.0
        %323 = vmatpush2.msra.mxu0 0.0
        %324 = vmatprep.subr.mxu0 0.0
        %325 = vmatpush2.msra.mxu0 0.0
        %326 = vmatprep.subr.mxu0 0.0
        %327 = vmatpush2.msra.mxu0 0.0
        %328 = vmatprep.subr.mxu0 0.0
        %329 = vmatpush2.msra.mxu0 0.0
        %330 = vmatprep.subr.mxu0 0.0
        %331 = vmatpush2.msra.mxu0 0.0
        %332 = vmatprep.subr.mxu0 0.0
        %333 = vmatpush2.msra.mxu0 0.0
        %334 = vmatprep.mubr.f32.mxu0 0.0
        %v335 = vand.u32 %v249, 4294901760
        %v336 = vsub.f32 %v249, %v335
        %v337 = vand.u32 %v336, 4294901760
        %v338 = vsub.f32 %v336, %v337
        %v339 = vand.u32 %v338, 4294901760
        %340 = vmatmul.mubr.f32.gmra.mxu0 %v339
        %v341 = vpop.f32.mrf.mxu0
        %v342 = vadd.f32 %v253, %v341
        %v343 = vpop.f32.mrf.mxu0
        %344 = vdwg.mxu0
        %345 = vmatprep.subr.mxu0 0.0
        %v346 = vand.u32 %v247, 4294901760
        %v347 = vsub.f32 %v247, %v346
        %v348 = vand.u32 %v347, 4294901760
        %v349 = vsub.f32 %v347, %v348
        %v350 = vand.u32 %v349, 4294901760
        %351 = vmatpush1.msra.mxu0 %v350
        %352 = vmatprep.subr.mxu0 0.0
        %v353 = vand.u32 %v246, 4294901760
        %v354 = vsub.f32 %v246, %v353
        %v355 = vand.u32 %v354, 4294901760
        %v356 = vsub.f32 %v354, %v355
        %v357 = vand.u32 %v356, 4294901760
        %358 = vmatpush1.msra.mxu0 %v357
        %359 = vmatprep.subr.mxu0 0.0
        %v360 = vand.u32 %v245, 4294901760
        %v361 = vsub.f32 %v245, %v360
        %v362 = vand.u32 %v361, 4294901760
        %v363 = vsub.f32 %v361, %v362
        %v364 = vand.u32 %v363, 4294901760
        %365 = vmatpush1.msra.mxu0 %v364
        %366 = vmatprep.subr.mxu0 0.0
        %v367 = vand.u32 %v244, 4294901760
        %v368 = vsub.f32 %v244, %v367
        %v369 = vand.u32 %v368, 4294901760
        %v370 = vsub.f32 %v368, %v369
        %v371 = vand.u32 %v370, 4294901760
        %372 = vmatpush1.msra.mxu0 %v371
        %373 = vmatprep.subr.mxu0 0.0
        %v374 = vand.u32 %v243, 4294901760
        %v375 = vsub.f32 %v243, %v374
        %v376 = vand.u32 %v375, 4294901760
        %v377 = vsub.f32 %v375, %v376
        %v378 = vand.u32 %v377, 4294901760
        %379 = vmatpush1.msra.mxu0 %v378
        %380 = vmatprep.subr.mxu0 0.0
        %v381 = vand.u32 %v242, 4294901760
        %v382 = vsub.f32 %v242, %v381
        %v383 = vand.u32 %v382, 4294901760
        %v384 = vsub.f32 %v382, %v383
        %v385 = vand.u32 %v384, 4294901760
        %386 = vmatpush1.msra.mxu0 %v385
        %387 = vmatprep.subr.mxu0 0.0
        %v388 = vand.u32 %v241, 4294901760
        %v389 = vsub.f32 %v241, %v388
        %v390 = vand.u32 %v389, 4294901760
        %v391 = vsub.f32 %v389, %v390
        %v392 = vand.u32 %v391, 4294901760
        %393 = vmatpush1.msra.mxu0 %v392
        %394 = vmatprep.subr.mxu0 0.0
        %v395 = vand.u32 %v240, 4294901760
        %v396 = vsub.f32 %v240, %v395
        %v397 = vand.u32 %v396, 4294901760
        %v398 = vsub.f32 %v396, %v397
        %v399 = vand.u32 %v398, 4294901760
        %400 = vmatpush1.msra.mxu0 %v399
        %401 = vmatprep.subr.mxu0 0.0
        %v402 = vand.u32 %v239, 4294901760
        %v403 = vsub.f32 %v239, %v402
        %v404 = vand.u32 %v403, 4294901760
        %v405 = vsub.f32 %v403, %v404
        %v406 = vand.u32 %v405, 4294901760
        %407 = vmatpush1.msra.mxu0 %v406
        %408 = vmatprep.subr.mxu0 0.0
        %v409 = vand.u32 %v238, 4294901760
        %v410 = vsub.f32 %v238, %v409
        %v411 = vand.u32 %v410, 4294901760
        %v412 = vsub.f32 %v410, %v411
        %v413 = vand.u32 %v412, 4294901760
        %414 = vmatpush1.msra.mxu0 %v413
        %415 = vmatprep.subr.mxu0 0.0
        %v416 = vand.u32 %v237, 4294901760
        %v417 = vsub.f32 %v237, %v416
        %v418 = vand.u32 %v417, 4294901760
        %v419 = vsub.f32 %v417, %v418
        %v420 = vand.u32 %v419, 4294901760
        %421 = vmatpush1.msra.mxu0 %v420
        %422 = vmatprep.subr.mxu0 0.0
        %v423 = vand.u32 %v236, 4294901760
        %v424 = vsub.f32 %v236, %v423
        %v425 = vand.u32 %v424, 4294901760
        %v426 = vsub.f32 %v424, %v425
        %v427 = vand.u32 %v426, 4294901760
        %428 = vmatpush1.msra.mxu0 %v427
        %429 = vmatprep.subr.mxu0 0.0
        %v430 = vand.u32 %v235, 4294901760
        %v431 = vsub.f32 %v235, %v430
        %v432 = vand.u32 %v431, 4294901760
        %v433 = vsub.f32 %v431, %v432
        %v434 = vand.u32 %v433, 4294901760
        %435 = vmatpush1.msra.mxu0 %v434
        %436 = vmatprep.subr.mxu0 0.0
        %v437 = vand.u32 %v234, 4294901760
        %v438 = vsub.f32 %v234, %v437
        %v439 = vand.u32 %v438, 4294901760
        %v440 = vsub.f32 %v438, %v439
        %v441 = vand.u32 %v440, 4294901760
        %442 = vmatpush1.msra.mxu0 %v441
        %443 = vmatprep.subr.mxu0 0.0
        %v444 = vand.u32 %v233, 4294901760
        %v445 = vsub.f32 %v233, %v444
        %v446 = vand.u32 %v445, 4294901760
        %v447 = vsub.f32 %v445, %v446
        %v448 = vand.u32 %v447, 4294901760
        %449 = vmatpush1.msra.mxu0 %v448
        %450 = vmatprep.subr.mxu0 0.0
        %v451 = vand.u32 %v232, 4294901760
        %v452 = vsub.f32 %v232, %v451
        %v453 = vand.u32 %v452, 4294901760
        %v454 = vsub.f32 %v452, %v453
        %v455 = vand.u32 %v454, 4294901760
        %456 = vmatpush1.msra.mxu0 %v455
        %457 = vmatprep.subr.mxu0 0.0
        %458 = vmatpush2.msra.mxu0 0.0
        %459 = vmatprep.subr.mxu0 0.0
        %460 = vmatpush2.msra.mxu0 0.0
        %461 = vmatprep.subr.mxu0 0.0
        %462 = vmatpush2.msra.mxu0 0.0
        %463 = vmatprep.subr.mxu0 0.0
        %464 = vmatpush2.msra.mxu0 0.0
        %465 = vmatprep.subr.mxu0 0.0
        %466 = vmatpush2.msra.mxu0 0.0
        %467 = vmatprep.subr.mxu0 0.0
        %468 = vmatpush2.msra.mxu0 0.0
        %469 = vmatprep.subr.mxu0 0.0
        %470 = vmatpush2.msra.mxu0 0.0
        %471 = vmatprep.subr.mxu0 0.0
        %472 = vmatpush2.msra.mxu0 0.0
        %473 = vmatprep.subr.mxu0 0.0
        %474 = vmatpush2.msra.mxu0 0.0
        %475 = vmatprep.subr.mxu0 0.0
        %476 = vmatpush2.msra.mxu0 0.0
        %477 = vmatprep.subr.mxu0 0.0
        %478 = vmatpush2.msra.mxu0 0.0
        %479 = vmatprep.subr.mxu0 0.0
        %480 = vmatpush2.msra.mxu0 0.0
        %481 = vmatprep.subr.mxu0 0.0
        %482 = vmatpush2.msra.mxu0 0.0
        %483 = vmatprep.subr.mxu0 0.0
        %484 = vmatpush2.msra.mxu0 0.0
        %485 = vmatprep.subr.mxu0 0.0
        %486 = vmatpush2.msra.mxu0 0.0
        %487 = vmatprep.subr.mxu0 0.0
        %488 = vmatpush2.msra.mxu0 0.0
        %489 = vmatprep.mubr.f32.mxu0 0.0
        %v490 = vand.u32 %v249, 4294901760
        %491 = vmatmul.mubr.f32.gmra.mxu0 %v490
        %v492 = vpop.f32.mrf.mxu0
        %v493 = vadd.f32 %v342, %v492
        %v494 = vpop.f32.mrf.mxu0
        %495 = vdwg.mxu0
        %496 = vmatprep.subr.mxu0 0.0
        %v497 = vand.u32 %v247, 4294901760
        %v498 = vsub.f32 %v247, %v497
        %499 = vmatpush1.msra.mxu0 %v498
        %500 = vmatprep.subr.mxu0 0.0
        %v501 = vand.u32 %v246, 4294901760
        %v502 = vsub.f32 %v246, %v501
        %503 = vmatpush1.msra.mxu0 %v502
        %504 = vmatprep.subr.mxu0 0.0
        %v505 = vand.u32 %v245, 4294901760
        %v506 = vsub.f32 %v245, %v505
        %507 = vmatpush1.msra.mxu0 %v506
        %508 = vmatprep.subr.mxu0 0.0
        %v509 = vand.u32 %v244, 4294901760
        %v510 = vsub.f32 %v244, %v509
        %511 = vmatpush1.msra.mxu0 %v510
        %512 = vmatprep.subr.mxu0 0.0
        %v513 = vand.u32 %v243, 4294901760
        %v514 = vsub.f32 %v243, %v513
        %515 = vmatpush1.msra.mxu0 %v514
        %516 = vmatprep.subr.mxu0 0.0
        %v517 = vand.u32 %v242, 4294901760
        %v518 = vsub.f32 %v242, %v517
        %519 = vmatpush1.msra.mxu0 %v518
        %520 = vmatprep.subr.mxu0 0.0
        %v521 = vand.u32 %v241, 4294901760
        %v522 = vsub.f32 %v241, %v521
        %523 = vmatpush1.msra.mxu0 %v522
        %524 = vmatprep.subr.mxu0 0.0
        %v525 = vand.u32 %v240, 4294901760
        %v526 = vsub.f32 %v240, %v525
        %527 = vmatpush1.msra.mxu0 %v526
        %528 = vmatprep.subr.mxu0 0.0
        %v529 = vand.u32 %v239, 4294901760
        %v530 = vsub.f32 %v239, %v529
        %531 = vmatpush1.msra.mxu0 %v530
        %532 = vmatprep.subr.mxu0 0.0
        %v533 = vand.u32 %v238, 4294901760
        %v534 = vsub.f32 %v238, %v533
        %535 = vmatpush1.msra.mxu0 %v534
        %536 = vmatprep.subr.mxu0 0.0
        %v537 = vand.u32 %v237, 4294901760
        %v538 = vsub.f32 %v237, %v537
        %539 = vmatpush1.msra.mxu0 %v538
        %540 = vmatprep.subr.mxu0 0.0
        %v541 = vand.u32 %v236, 4294901760
        %v542 = vsub.f32 %v236, %v541
        %543 = vmatpush1.msra.mxu0 %v542
        %544 = vmatprep.subr.mxu0 0.0
        %v545 = vand.u32 %v235, 4294901760
        %v546 = vsub.f32 %v235, %v545
        %547 = vmatpush1.msra.mxu0 %v546
        %548 = vmatprep.subr.mxu0 0.0
        %v549 = vand.u32 %v234, 4294901760
        %v550 = vsub.f32 %v234, %v549
        %551 = vmatpush1.msra.mxu0 %v550
        %552 = vmatprep.subr.mxu0 0.0
        %v553 = vand.u32 %v233, 4294901760
        %v554 = vsub.f32 %v233, %v553
        %555 = vmatpush1.msra.mxu0 %v554
        %556 = vmatprep.subr.mxu0 0.0
        %v557 = vand.u32 %v232, 4294901760
        %v558 = vsub.f32 %v232, %v557
        %559 = vmatpush1.msra.mxu0 %v558
        %560 = vmatprep.subr.mxu0 0.0
        %561 = vmatpush2.msra.mxu0 0.0
        %562 = vmatprep.subr.mxu0 0.0
        %563 = vmatpush2.msra.mxu0 0.0
        %564 = vmatprep.subr.mxu0 0.0
        %565 = vmatpush2.msra.mxu0 0.0
        %566 = vmatprep.subr.mxu0 0.0
        %567 = vmatpush2.msra.mxu0 0.0
        %568 = vmatprep.subr.mxu0 0.0
        %569 = vmatpush2.msra.mxu0 0.0
        %570 = vmatprep.subr.mxu0 0.0
        %571 = vmatpush2.msra.mxu0 0.0
        %572 = vmatprep.subr.mxu0 0.0
        %573 = vmatpush2.msra.mxu0 0.0
        %574 = vmatprep.subr.mxu0 0.0
        %575 = vmatpush2.msra.mxu0 0.0
        %576 = vmatprep.subr.mxu0 0.0
        %577 = vmatpush2.msra.mxu0 0.0
        %578 = vmatprep.subr.mxu0 0.0
        %579 = vmatpush2.msra.mxu0 0.0
        %580 = vmatprep.subr.mxu0 0.0
        %581 = vmatpush2.msra.mxu0 0.0
        %582 = vmatprep.subr.mxu0 0.0
        %583 = vmatpush2.msra.mxu0 0.0
        %584 = vmatprep.subr.mxu0 0.0
        %585 = vmatpush2.msra.mxu0 0.0
        %586 = vmatprep.subr.mxu0 0.0
        %587 = vmatpush2.msra.mxu0 0.0
        %588 = vmatprep.subr.mxu0 0.0
        %589 = vmatpush2.msra.mxu0 0.0
        %590 = vmatprep.subr.mxu0 0.0
        %591 = vmatpush2.msra.mxu0 0.0
        %592 = vmatprep.mubr.f32.mxu0 0.0
        %v593 = vand.u32 %v249, 4294901760
        %v594 = vsub.f32 %v249, %v593
        %595 = vmatmul.mubr.f32.gmra.mxu0 %v594
        %v596 = vpop.f32.mrf.mxu0
        %v597 = vadd.f32 %v493, %v596
        %v598 = vpop.f32.mrf.mxu0
        %599 = vdwg.mxu0
        %600 = vmatprep.subr.mxu0 0.0
        %v601 = vand.u32 %v247, 4294901760
        %602 = vmatpush1.msra.mxu0 %v601
        %603 = vmatprep.subr.mxu0 0.0
        %v604 = vand.u32 %v246, 4294901760
        %605 = vmatpush1.msra.mxu0 %v604
        %606 = vmatprep.subr.mxu0 0.0
        %v607 = vand.u32 %v245, 4294901760
        %608 = vmatpush1.msra.mxu0 %v607
        %609 = vmatprep.subr.mxu0 0.0
        %v610 = vand.u32 %v244, 4294901760
        %611 = vmatpush1.msra.mxu0 %v610
        %612 = vmatprep.subr.mxu0 0.0
        %v613 = vand.u32 %v243, 4294901760
        %614 = vmatpush1.msra.mxu0 %v613
        %615 = vmatprep.subr.mxu0 0.0
        %v616 = vand.u32 %v242, 4294901760
        %617 = vmatpush1.msra.mxu0 %v616
        %618 = vmatprep.subr.mxu0 0.0
        %v619 = vand.u32 %v241, 4294901760
        %620 = vmatpush1.msra.mxu0 %v619
        %621 = vmatprep.subr.mxu0 0.0
        %v622 = vand.u32 %v240, 4294901760
        %623 = vmatpush1.msra.mxu0 %v622
        %624 = vmatprep.subr.mxu0 0.0
        %v625 = vand.u32 %v239, 4294901760
        %626 = vmatpush1.msra.mxu0 %v625
        %627 = vmatprep.subr.mxu0 0.0
        %v628 = vand.u32 %v238, 4294901760
        %629 = vmatpush1.msra.mxu0 %v628
        %630 = vmatprep.subr.mxu0 0.0
        %v631 = vand.u32 %v237, 4294901760
        %632 = vmatpush1.msra.mxu0 %v631
        %633 = vmatprep.subr.mxu0 0.0
        %v634 = vand.u32 %v236, 4294901760
        %635 = vmatpush1.msra.mxu0 %v634
        %636 = vmatprep.subr.mxu0 0.0
        %v637 = vand.u32 %v235, 4294901760
        %638 = vmatpush1.msra.mxu0 %v637
        %639 = vmatprep.subr.mxu0 0.0
        %v640 = vand.u32 %v234, 4294901760
        %641 = vmatpush1.msra.mxu0 %v640
        %642 = vmatprep.subr.mxu0 0.0
        %v643 = vand.u32 %v233, 4294901760
        %644 = vmatpush1.msra.mxu0 %v643
        %645 = vmatprep.subr.mxu0 0.0
        %v646 = vand.u32 %v232, 4294901760
        %647 = vmatpush1.msra.mxu0 %v646
        %648 = vmatprep.subr.mxu0 0.0
        %649 = vmatpush2.msra.mxu0 0.0
        %650 = vmatprep.subr.mxu0 0.0
        %651 = vmatpush2.msra.mxu0 0.0
        %652 = vmatprep.subr.mxu0 0.0
        %653 = vmatpush2.msra.mxu0 0.0
        %654 = vmatprep.subr.mxu0 0.0
        %655 = vmatpush2.msra.mxu0 0.0
        %656 = vmatprep.subr.mxu0 0.0
        %657 = vmatpush2.msra.mxu0 0.0
        %658 = vmatprep.subr.mxu0 0.0
        %659 = vmatpush2.msra.mxu0 0.0
        %660 = vmatprep.subr.mxu0 0.0
        %661 = vmatpush2.msra.mxu0 0.0
        %662 = vmatprep.subr.mxu0 0.0
        %663 = vmatpush2.msra.mxu0 0.0
        %664 = vmatprep.subr.mxu0 0.0
        %665 = vmatpush2.msra.mxu0 0.0
        %666 = vmatprep.subr.mxu0 0.0
        %667 = vmatpush2.msra.mxu0 0.0
        %668 = vmatprep.subr.mxu0 0.0
        %669 = vmatpush2.msra.mxu0 0.0
        %670 = vmatprep.subr.mxu0 0.0
        %671 = vmatpush2.msra.mxu0 0.0
        %672 = vmatprep.subr.mxu0 0.0
        %673 = vmatpush2.msra.mxu0 0.0
        %674 = vmatprep.subr.mxu0 0.0
        %675 = vmatpush2.msra.mxu0 0.0
        %676 = vmatprep.subr.mxu0 0.0
        %677 = vmatpush2.msra.mxu0 0.0
        %678 = vmatprep.subr.mxu0 0.0
        %679 = vmatpush2.msra.mxu0 0.0
        %680 = vmatprep.mubr.f32.mxu0 0.0
        %v681 = vand.u32 %v249, 4294901760
        %v682 = vsub.f32 %v249, %v681
        %v683 = vand.u32 %v682, 4294901760
        %684 = vmatmul.mubr.f32.gmra.mxu0 %v683
        %v685 = vpop.f32.mrf.mxu0
        %v686 = vadd.f32 %v597, %v685
        %v687 = vpop.f32.mrf.mxu0
        %688 = vdwg.mxu0
        %689 = vmatprep.subr.mxu0 0.0
        %v690 = vand.u32 %v247, 4294901760
        %v691 = vsub.f32 %v247, %v690
        %v692 = vand.u32 %v691, 4294901760
        %693 = vmatpush1.msra.mxu0 %v692
        %694 = vmatprep.subr.mxu0 0.0
        %v695 = vand.u32 %v246, 4294901760
        %v696 = vsub.f32 %v246, %v695
        %v697 = vand.u32 %v696, 4294901760
        %698 = vmatpush1.msra.mxu0 %v697
        %699 = vmatprep.subr.mxu0 0.0
        %v700 = vand.u32 %v245, 4294901760
        %v701 = vsub.f32 %v245, %v700
        %v702 = vand.u32 %v701, 4294901760
        %703 = vmatpush1.msra.mxu0 %v702
        %704 = vmatprep.subr.mxu0 0.0
        %v705 = vand.u32 %v244, 4294901760
        %v706 = vsub.f32 %v244, %v705
        %v707 = vand.u32 %v706, 4294901760
        %708 = vmatpush1.msra.mxu0 %v707
        %709 = vmatprep.subr.mxu0 0.0
        %v710 = vand.u32 %v243, 4294901760
        %v711 = vsub.f32 %v243, %v710
        %v712 = vand.u32 %v711, 4294901760
        %713 = vmatpush1.msra.mxu0 %v712
        %714 = vmatprep.subr.mxu0 0.0
        %v715 = vand.u32 %v242, 4294901760
        %v716 = vsub.f32 %v242, %v715
        %v717 = vand.u32 %v716, 4294901760
        %718 = vmatpush1.msra.mxu0 %v717
        %719 = vmatprep.subr.mxu0 0.0
        %v720 = vand.u32 %v241, 4294901760
        %v721 = vsub.f32 %v241, %v720
        %v722 = vand.u32 %v721, 4294901760
        %723 = vmatpush1.msra.mxu0 %v722
        %724 = vmatprep.subr.mxu0 0.0
        %v725 = vand.u32 %v240, 4294901760
        %v726 = vsub.f32 %v240, %v725
        %v727 = vand.u32 %v726, 4294901760
        %728 = vmatpush1.msra.mxu0 %v727
        %729 = vmatprep.subr.mxu0 0.0
        %v730 = vand.u32 %v239, 4294901760
        %v731 = vsub.f32 %v239, %v730
        %v732 = vand.u32 %v731, 4294901760
        %733 = vmatpush1.msra.mxu0 %v732
        %734 = vmatprep.subr.mxu0 0.0
        %v735 = vand.u32 %v238, 4294901760
        %v736 = vsub.f32 %v238, %v735
        %v737 = vand.u32 %v736, 4294901760
        %738 = vmatpush1.msra.mxu0 %v737
        %739 = vmatprep.subr.mxu0 0.0
        %v740 = vand.u32 %v237, 4294901760
        %v741 = vsub.f32 %v237, %v740
        %v742 = vand.u32 %v741, 4294901760
        %743 = vmatpush1.msra.mxu0 %v742
        %744 = vmatprep.subr.mxu0 0.0
        %v745 = vand.u32 %v236, 4294901760
        %v746 = vsub.f32 %v236, %v745
        %v747 = vand.u32 %v746, 4294901760
        %748 = vmatpush1.msra.mxu0 %v747
        %749 = vmatprep.subr.mxu0 0.0
        %v750 = vand.u32 %v235, 4294901760
        %v751 = vsub.f32 %v235, %v750
        %v752 = vand.u32 %v751, 4294901760
        %753 = vmatpush1.msra.mxu0 %v752
        %754 = vmatprep.subr.mxu0 0.0
        %v755 = vand.u32 %v234, 4294901760
        %v756 = vsub.f32 %v234, %v755
        %v757 = vand.u32 %v756, 4294901760
        %758 = vmatpush1.msra.mxu0 %v757
        %759 = vmatprep.subr.mxu0 0.0
        %v760 = vand.u32 %v233, 4294901760
        %v761 = vsub.f32 %v233, %v760
        %v762 = vand.u32 %v761, 4294901760
        %763 = vmatpush1.msra.mxu0 %v762
        %764 = vmatprep.subr.mxu0 0.0
        %v765 = vand.u32 %v232, 4294901760
        %v766 = vsub.f32 %v232, %v765
        %v767 = vand.u32 %v766, 4294901760
        %768 = vmatpush1.msra.mxu0 %v767
        %769 = vmatprep.subr.mxu0 0.0
        %770 = vmatpush2.msra.mxu0 0.0
        %771 = vmatprep.subr.mxu0 0.0
        %772 = vmatpush2.msra.mxu0 0.0
        %773 = vmatprep.subr.mxu0 0.0
        %774 = vmatpush2.msra.mxu0 0.0
        %775 = vmatprep.subr.mxu0 0.0
        %776 = vmatpush2.msra.mxu0 0.0
        %777 = vmatprep.subr.mxu0 0.0
        %778 = vmatpush2.msra.mxu0 0.0
        %779 = vmatprep.subr.mxu0 0.0
        %780 = vmatpush2.msra.mxu0 0.0
        %781 = vmatprep.subr.mxu0 0.0
        %782 = vmatpush2.msra.mxu0 0.0
        %783 = vmatprep.subr.mxu0 0.0
        %784 = vmatpush2.msra.mxu0 0.0
        %785 = vmatprep.subr.mxu0 0.0
        %786 = vmatpush2.msra.mxu0 0.0
        %787 = vmatprep.subr.mxu0 0.0
        %788 = vmatpush2.msra.mxu0 0.0
        %789 = vmatprep.subr.mxu0 0.0
        %790 = vmatpush2.msra.mxu0 0.0
        %791 = vmatprep.subr.mxu0 0.0
        %792 = vmatpush2.msra.mxu0 0.0
        %793 = vmatprep.subr.mxu0 0.0
        %794 = vmatpush2.msra.mxu0 0.0
        %795 = vmatprep.subr.mxu0 0.0
        %796 = vmatpush2.msra.mxu0 0.0
        %797 = vmatprep.subr.mxu0 0.0
        %798 = vmatpush2.msra.mxu0 0.0
        %799 = vmatprep.subr.mxu0 0.0
        %800 = vmatpush2.msra.mxu0 0.0
        %801 = vmatprep.mubr.f32.mxu0 0.0
        %v802 = vand.u32 %v249, 4294901760
        %803 = vmatmul.mubr.f32.gmra.mxu0 %v802
        %v804 = vpop.f32.mrf.mxu0
        %v805 = vadd.f32 %v686, %v804
        %v806 = vpop.f32.mrf.mxu0
        %807 = vdwg.mxu0
        %808 = vmatprep.subr.mxu0 0.0
        %v809 = vand.u32 %v247, 4294901760
        %810 = vmatpush1.msra.mxu0 %v809
        %811 = vmatprep.subr.mxu0 0.0
        %v812 = vand.u32 %v246, 4294901760
        %813 = vmatpush1.msra.mxu0 %v812
        %814 = vmatprep.subr.mxu0 0.0
        %v815 = vand.u32 %v245, 4294901760
        %816 = vmatpush1.msra.mxu0 %v815
        %817 = vmatprep.subr.mxu0 0.0
        %v818 = vand.u32 %v244, 4294901760
        %819 = vmatpush1.msra.mxu0 %v818
        %820 = vmatprep.subr.mxu0 0.0
        %v821 = vand.u32 %v243, 4294901760
        %822 = vmatpush1.msra.mxu0 %v821
        %823 = vmatprep.subr.mxu0 0.0
        %v824 = vand.u32 %v242, 4294901760
        %825 = vmatpush1.msra.mxu0 %v824
        %826 = vmatprep.subr.mxu0 0.0
        %v827 = vand.u32 %v241, 4294901760
        %828 = vmatpush1.msra.mxu0 %v827
        %829 = vmatprep.subr.mxu0 0.0
        %v830 = vand.u32 %v240, 4294901760
        %831 = vmatpush1.msra.mxu0 %v830
        %832 = vmatprep.subr.mxu0 0.0
        %v833 = vand.u32 %v239, 4294901760
        %834 = vmatpush1.msra.mxu0 %v833
        %835 = vmatprep.subr.mxu0 0.0
        %v836 = vand.u32 %v238, 4294901760
        %837 = vmatpush1.msra.mxu0 %v836
        %838 = vmatprep.subr.mxu0 0.0
        %v839 = vand.u32 %v237, 4294901760
        %840 = vmatpush1.msra.mxu0 %v839
        %841 = vmatprep.subr.mxu0 0.0
        %v842 = vand.u32 %v236, 4294901760
        %843 = vmatpush1.msra.mxu0 %v842
        %844 = vmatprep.subr.mxu0 0.0
        %v845 = vand.u32 %v235, 4294901760
        %846 = vmatpush1.msra.mxu0 %v845
        %847 = vmatprep.subr.mxu0 0.0
        %v848 = vand.u32 %v234, 4294901760
        %849 = vmatpush1.msra.mxu0 %v848
        %850 = vmatprep.subr.mxu0 0.0
        %v851 = vand.u32 %v233, 4294901760
        %852 = vmatpush1.msra.mxu0 %v851
        %853 = vmatprep.subr.mxu0 0.0
        %v854 = vand.u32 %v232, 4294901760
        %855 = vmatpush1.msra.mxu0 %v854
        %856 = vmatprep.subr.mxu0 0.0
        %857 = vmatpush2.msra.mxu0 0.0
        %858 = vmatprep.subr.mxu0 0.0
        %859 = vmatpush2.msra.mxu0 0.0
        %860 = vmatprep.subr.mxu0 0.0
        %861 = vmatpush2.msra.mxu0 0.0
        %862 = vmatprep.subr.mxu0 0.0
        %863 = vmatpush2.msra.mxu0 0.0
        %864 = vmatprep.subr.mxu0 0.0
        %865 = vmatpush2.msra.mxu0 0.0
        %866 = vmatprep.subr.mxu0 0.0
        %867 = vmatpush2.msra.mxu0 0.0
        %868 = vmatprep.subr.mxu0 0.0
        %869 = vmatpush2.msra.mxu0 0.0
        %870 = vmatprep.subr.mxu0 0.0
        %871 = vmatpush2.msra.mxu0 0.0
        %872 = vmatprep.subr.mxu0 0.0
        %873 = vmatpush2.msra.mxu0 0.0
        %874 = vmatprep.subr.mxu0 0.0
        %875 = vmatpush2.msra.mxu0 0.0
        %876 = vmatprep.subr.mxu0 0.0
        %877 = vmatpush2.msra.mxu0 0.0
        %878 = vmatprep.subr.mxu0 0.0
        %879 = vmatpush2.msra.mxu0 0.0
        %880 = vmatprep.subr.mxu0 0.0
        %881 = vmatpush2.msra.mxu0 0.0
        %882 = vmatprep.subr.mxu0 0.0
        %883 = vmatpush2.msra.mxu0 0.0
        %884 = vmatprep.subr.mxu0 0.0
        %885 = vmatpush2.msra.mxu0 0.0
        %886 = vmatprep.subr.mxu0 0.0
        %887 = vmatpush2.msra.mxu0 0.0
        %888 = vmatprep.mubr.f32.mxu0 0.0
        %v889 = vand.u32 %v249, 4294901760
        %890 = vmatmul.mubr.f32.gmra.mxu0 %v889
        %v891 = vpop.f32.mrf.mxu0
        %v892 = vadd.f32 %v805, %v891
        %v893 = vpop.f32.mrf.mxu0
        %894 = vdwg.mxu0
        %p895 = scmp.lt.s32.totalorder %s19, 2
        // Predicated region
        $region49: #{wsc_1det_struct_forward.1} parent=31 // pred_check
          %p896 = pneg %p895
        $region50: #{wsc_1det_struct_forward.1} parent=31 // pred_check_branch
          %898 = sbr.rel (%p896) target = $region52
        $region51: #{wsc_1det_struct_forward.1} parent=31 // pred_region
          %v899 = vmax.f32 %v892, 0.0
          %v900 = vrot.slane %v899, 4
          %v901 = vadd.f32 %v899, %v900
          %v902 = vrot.slane %v901, 2
          %v903 = vadd.f32 %v901, %v902
          %v904 = vrot.slane %v903, 1
          %v905 = vadd.f32 %v903, %v904
          %v906 = vrcp.pop 8.0
          %v907 = vmul.f32 %v905, %v906
          %v908 = vsub.f32 %v899, %v907
          %v909 = vmul.f32 %v908, %v908
          %v910 = vrot.slane %v909, 4
          %v911 = vadd.f32 %v909, %v910
          %v912 = vrot.slane %v911, 2
          %v913 = vadd.f32 %v911, %v912
          %v914 = vrot.slane %v913, 1
          %v915 = vadd.f32 %v913, %v914
          %v916 = vmul.f32 %v915, %v906
          %v917 = vadd.f32 %v916, 1e-05
          %v918 = vrsqrt.pop %v917
          %v919 = vmul.f32 %v908, %v918
          %v920 = vlaneseq
          %v921 = vshrl.u32 %v920, 7
          %v922 = vsub.s32 1, %v921
          %v923 = vrot.slane %v248, %v922
          %v924 = vmul.f32 %v919, %v923
          %v925 = vlaneseq
          %v926 = vshrl.u32 %v925, 7
          %v927 = vsub.s32 2, %v926
          %v928 = vrot.slane %v248, %v927
          %v929 = vadd.f32 %v924, %v928
          %930 = vst [vmem:[#allocation2] sm:$0xff] %v929
        $region52: #{wsc_1det_struct_forward.1} parent=31 // pred_fallthru
          _
        %p931 = scmp.eq.s32.totalorder %s19, 2
        // Predicated region
        $region53: #{wsc_1det_struct_forward.1} parent=31 // pred_check
          %p932 = pneg %p931
        $region54: #{wsc_1det_struct_forward.1} parent=31 // pred_check_branch
          %934 = sbr.rel (%p932) target = $region56
        $region55: #{wsc_1det_struct_forward.1} parent=31 // pred_region
          %935 = vst [vmem:[#allocation9] sm:$0xff] %v892
        $region56: #{wsc_1det_struct_forward.1} parent=31 // pred_fallthru
          _
        // Predicated region
        $region57: #{wsc_1det_struct_forward.1} parent=31 // pred_check
          %p936 = pneg %p105
        $region58: #{wsc_1det_struct_forward.1} parent=31 // pred_check_branch
          %938 = sbr.rel (%p936) target = $region60
        $region59: #{wsc_1det_struct_forward.1} parent=31 // pred_region
          %s940 = ssub.s32 128, 128
          %941 = vsyncadd [#allocation5], %s940
          %s943 = sshll.u32 [#allocation9], 4
          %s944 = int_to_ptr.vmem [resolvable:$true] %s943
          %946 = dma.vmem_to_hbm [thread:$0]  %s944, 128, %s3, [#allocation5]
        $region60: #{wsc_1det_struct_forward.1} parent=31 // pred_fallthru
          _
        // Predicated region
        $region61: #{wsc_1det_struct_forward.1} parent=31 // pred_check
          %p947 = pneg %p105
        $region62: #{wsc_1det_struct_forward.1} parent=31 // pred_check_branch
          %949 = sbr.rel (%p947) target = $region64
        $region63: #{wsc_1det_struct_forward.1} parent=31 // pred_region
          %950 = dma.done [#allocation5], 128
        $region64: #{wsc_1det_struct_forward.1} parent=31 // pred_fallthru
          _
      $region32: #{wsc_1det_struct_forward.1} parent=5 // pred_fallthru
        _
      %p951 = scmp.le.s32.totalorder 2, %s14
      // Predicated region
      $region65: #{wsc_1det_struct_forward.1} parent=5 // pred_check
        %p952 = pneg %p951
      $region66: #{wsc_1det_struct_forward.1} parent=5 // pred_check_branch
        %954 = sbr.rel (%p952) target = $region68
      $region67: #{wsc_1det_struct_forward.1} parent=5 // pred_region
        %s955 = ssub.s32 %s14, 2
      $region68: #{wsc_1det_struct_forward.1} parent=5 // pred_fallthru
        _
    $region6: #{wsc_1det_struct_forward.1} parent=1 // loop_footer
      %s18 = sadd.s32 1, %s14
    $region7: #{wsc_1det_struct_forward.1} parent=1 // loop_footer_branch
      %13 = sbr.rel target = $region3
    $region8: #{wsc_1det_struct_forward.1} parent=1 // loop_exit
      _
    %956 = vsyncpa [#allocation4], 1
    %s957 = scalar_lea.sflag [#allocation4], 1
    %958 = vsyncpa %s957, 1
    %959 = vsyncpa [#allocation7], 1
    %s960 = scalar_lea.sflag [#allocation7], 1
    %961 = vsyncpa %s960, 1
    %962 = vsyncpa [#allocation5], 1
    %s963 = scalar_lea.sflag [#allocation5], 1
    %964 = vsyncpa %s963, 1

</llo_original>
